<compile_context>
chip_gen: v6e
topology: v6e:2x2x1
jax: 0.10.0
libtpu: 0.0.40
codegen_flags: <defaults>
</compile_context>

<pallas_src>
import jax
import jax.numpy as jnp
from jax.experimental import pallas as pl
from jax.experimental.pallas import tpu as pltpu


def _round_up(x: int, m: int) -> int:
    return ((x + m - 1) // m) * m


def _theory_kernel(x_ref, w1_ref, w2_ref, b2_ref, out_ref):
    """out = relu(x_aug @ W1_aug) @ W2_pad + b2_pad  (all tiles resident in VMEM)."""
    x = x_ref[...]                                                   # (bb, F+A+1)
    h = jnp.dot(x, w1_ref[...], preferred_element_type=jnp.float32)  # (bb, H)
    h = jnp.maximum(h, 0.0)                                          # ReLU
    out = jnp.dot(h.astype(w2_ref.dtype), w2_ref[...],
                  preferred_element_type=jnp.float32)                # (bb, Fp)
    out_ref[...] = (out + b2_ref[...]).astype(out_ref.dtype)


def init_params(key, feature_size, n_actions, hidden_size, dtype=jnp.float32):
    """PyTorch nn.Linear-style init. Weights stored pre-transposed as (in, out)."""
    k1, k2, k3, k4 = jax.random.split(key, 4)
    in1 = feature_size + n_actions
    bd1 = 1.0 / float(in1) ** 0.5
    bd2 = 1.0 / float(hidden_size) ** 0.5
    w1_t = jax.random.uniform(k1, (in1, hidden_size), dtype, -bd1, bd1)
    b1 = jax.random.uniform(k2, (hidden_size,), dtype, -bd1, bd1)
    w2_t = jax.random.uniform(k3, (hidden_size, feature_size), dtype, -bd2, bd2)
    b2 = jax.random.uniform(k4, (feature_size,), dtype, -bd2, bd2)
    return w1_t, b1, w2_t, b2


def pack_params(w1_t, b1, w2_t, b2, lane=128):
    """One-time packing: fold b1 into W1 (extra ones row), pad W2/b2 to lane-dense width."""
    k, h = w1_t.shape
    f = w2_t.shape[1]
    fp = _round_up(f, lane)
    w1_aug = jnp.concatenate([w1_t, b1.reshape(1, h)], axis=0)       # (F+A+1, H)
    w2_pad = jnp.pad(w2_t, ((0, 0), (0, fp - f)))                    # (H, Fp)
    b2_pad = jnp.pad(b2.reshape(1, f), ((0, 0), (0, fp - f)))        # (1, Fp)
    return w1_aug, w2_pad, b2_pad


def theory_model_forward(state_features, action, w1_aug, w2_pad, b2_pad,
                         *, max_block_b=128):
    """state_features: (B, F) float; action: (B,) or (B, 1) int.
    Packed params from pack_params(). Returns predicted next features (B, F)."""
    B, F = state_features.shape
    K1, H = w1_aug.shape                 # K1 = F + A + 1
    A = K1 - F - 1
    Fp = w2_pad.shape[1]

    # --- wrapper-side prep (cheap, fused by XLA): one-hot, concat, ones column ---
    if action.ndim > 1 and action.shape[-1] == 1:
        action = action.squeeze(-1)
    one_hot = jax.nn.one_hot(action, A, dtype=state_features.dtype)
    ones = jnp.ones((B, 1), dtype=state_features.dtype)
    x_aug = jnp.concatenate([state_features, one_hot, ones], axis=-1)   # (B, K1)

    # Batch tiling: single block for small B, else 128-row blocks sharded "parallel".
    bb = B if B <= max_block_b else max_block_b
    grid = (pl.cdiv(B, bb),)

    cost = pl.CostEstimate(
        flops=2 * B * K1 * H + 2 * B * H * Fp,
        transcendentals=0,
        bytes_accessed=4 * (B * K1 + K1 * H + H * Fp + Fp + B * Fp),
    )

    vmem = pltpu.MemorySpace.VMEM
    out_padded = pl.pallas_call(
        _theory_kernel,
        out_shape=jax.ShapeDtypeStruct((B, Fp), state_features.dtype),
        grid=grid,
        in_specs=[
            pl.BlockSpec((bb, K1), lambda i: (i, 0), memory_space=vmem),  # x_aug
            pl.BlockSpec((K1, H), lambda i: (0, 0), memory_space=vmem),   # W1_aug
            pl.BlockSpec((H, Fp), lambda i: (0, 0), memory_space=vmem),   # W2_pad
            pl.BlockSpec((1, Fp), lambda i: (0, 0), memory_space=vmem),   # b2_pad
        ],
        out_specs=pl.BlockSpec((bb, Fp), lambda i: (i, 0), memory_space=vmem),
        compiler_params=pltpu.CompilerParams(
            dimension_semantics=("parallel",)),
        cost_estimate=cost,
    )(x_aug, w1_aug, w2_pad, b2_pad)

    # Slice lane-padded output back to the true feature width.
    return out_padded[:, :F]


if __name__ == "__main__":
    batch = 8
    feature_size = 32
    n_actions = 8          # Discrete(8)
    hidden_size = 256

    key = jax.random.PRNGKey(0)
    k_feat, k_act, k_param = jax.random.split(key, 3)

    features = jax.random.normal(k_feat, (batch, feature_size), jnp.float32)
    # (B, 1) int actions exercise the squeeze(-1) branch of the reference forward.
    action = jax.random.randint(k_act, (batch, 1), 0, n_actions, jnp.int32)

    w1_t, b1, w2_t, b2 = init_params(k_param, feature_size, n_actions, hidden_size)
    w1_aug, w2_pad, b2_pad = pack_params(w1_t, b1, w2_t, b2)

    out = theory_model_forward(features, action, w1_aug, w2_pad, b2_pad)
    jax.block_until_ready(out)

    # Pure-JAX reference (same math as the PyTorch module).
    act_sq = action.squeeze(-1)
    oh = jax.nn.one_hot(act_sq, n_actions, dtype=jnp.float32)
    x_ref = jnp.concatenate([features, oh], axis=-1)
    h_ref = jnp.maximum(x_ref @ w1_t + b1, 0.0)
    ref = h_ref @ w2_t + b2

    assert out.shape == (batch, feature_size)
    assert jnp.allclose(out, ref, atol=1e-4, rtol=1e-4), \
        float(jnp.max(jnp.abs(out - ref)))

    print("KERNEL_OK")
</pallas_src>

<mosaic_0001>
module attributes {stable_mosaic.version = 11 : i64} {
  func.func @_theory_kernel(%arg0: i32, %arg1: memref<8x41xf32, #tpu.memory_space<vmem>>, %arg2: memref<41x256xf32, #tpu.memory_space<vmem>>, %arg3: memref<256x128xf32, #tpu.memory_space<vmem>>, %arg4: memref<1x128xf32, #tpu.memory_space<vmem>>, %arg5: memref<8x128xf32, #tpu.memory_space<vmem>>) attributes {dimension_semantics = [#tpu.dimension_semantics<parallel>], iteration_bounds = array<i64: 1>, scalar_prefetch = 0 : i64, scratch_operands = 0 : i64, tpu.core_type = #tpu.core_type<tc>, window_params = [{transform_indices = @transform_0, window_bounds = array<i64: 8, 41>}, {pipeline_mode = #tpu.pipeline_mode<synchronous>, transform_indices = @transform_1, window_bounds = array<i64: 41, 256>}, {pipeline_mode = #tpu.pipeline_mode<synchronous>, transform_indices = @transform_2, window_bounds = array<i64: 256, 128>}, {pipeline_mode = #tpu.pipeline_mode<synchronous>, transform_indices = @transform_3, window_bounds = array<i64: 1, 128>}, {transform_indices = @transform_4, window_bounds = array<i64: 8, 128>}]} {
    %c0 = arith.constant 0 : index
    %c0_0 = arith.constant 0 : index
    %0 = vector.load %arg1[%c0, %c0_0] : memref<8x41xf32, #tpu.memory_space<vmem>>, vector<8x41xf32>
    %c0_1 = arith.constant 0 : index
    %c0_2 = arith.constant 0 : index
    %1 = vector.load %arg2[%c0_1, %c0_2] : memref<41x256xf32, #tpu.memory_space<vmem>>, vector<41x256xf32>
    %cst = arith.constant dense<0.000000e+00> : vector<8x256xf32>
    %2 = tpu.matmul %0, %1, %cst {dimension_numbers = #tpu.dot_dimension_numbers<[1], [0], [0], [1], [0, 0, 1, 1], [], []>} : vector<8x41xf32>, vector<41x256xf32>, vector<8x256xf32> -> vector<8x256xf32>
    %cst_3 = arith.constant 0.000000e+00 : f32
    %3 = vector.broadcast %cst_3 : f32 to vector<8x256xf32>
    %4 = arith.maximumf %2, %3 : vector<8x256xf32>
    %c0_4 = arith.constant 0 : index
    %c0_5 = arith.constant 0 : index
    %5 = vector.load %arg3[%c0_4, %c0_5] : memref<256x128xf32, #tpu.memory_space<vmem>>, vector<256x128xf32>
    %cst_6 = arith.constant dense<0.000000e+00> : vector<8x128xf32>
    %6 = tpu.matmul %4, %5, %cst_6 {dimension_numbers = #tpu.dot_dimension_numbers<[1], [0], [0], [1], [0, 0, 1, 1], [], []>} : vector<8x256xf32>, vector<256x128xf32>, vector<8x128xf32> -> vector<8x128xf32>
    %c0_7 = arith.constant 0 : index
    %c0_8 = arith.constant 0 : index
    %7 = vector.load %arg4[%c0_7, %c0_8] : memref<1x128xf32, #tpu.memory_space<vmem>>, vector<1x128xf32>
    %8 = vector.broadcast %7 : vector<1x128xf32> to vector<8x128xf32>
    %9 = arith.addf %6, %8 : vector<8x128xf32>
    %c0_9 = arith.constant 0 : index
    %c0_10 = arith.constant 0 : index
    %10 = vector.load %arg5[%c0_9, %c0_10] : memref<8x128xf32, #tpu.memory_space<vmem>>, vector<8x128xf32>
    tpu.vector_store %arg5[%c0_9, %c0_10], %9 {strides = array<i32>} : memref<8x128xf32, #tpu.memory_space<vmem>>, vector<8x128xf32>,
    return
  }
  func.func @transform_0(%arg0: i32) -> (i32, i32) {
    %c0_i32 = arith.constant 0 : i32
    %c0_i32_0 = arith.constant 0 : i32
    return %arg0, %c0_i32 : i32, i32
  }
  func.func @transform_1(%arg0: i32) -> (i32, i32) {
    %c0_i32 = arith.constant 0 : i32
    %c0_i32_0 = arith.constant 0 : i32
    %c0_i32_1 = arith.constant 0 : i32
    return %c0_i32, %c0_i32_0 : i32, i32
  }
  func.func @transform_2(%arg0: i32) -> (i32, i32) {
    %c0_i32 = arith.constant 0 : i32
    %c0_i32_0 = arith.constant 0 : i32
    %c0_i32_1 = arith.constant 0 : i32
    return %c0_i32, %c0_i32_0 : i32, i32
  }
  func.func @transform_3(%arg0: i32) -> (i32, i32) {
    %c0_i32 = arith.constant 0 : i32
    %c0_i32_0 = arith.constant 0 : i32
    %c0_i32_1 = arith.constant 0 : i32
    return %c0_i32, %c0_i32_0 : i32, i32
  }
  func.func @transform_4(%arg0: i32) -> (i32, i32) {
    %c0_i32 = arith.constant 0 : i32
    %c0_i32_0 = arith.constant 0 : i32
    return %arg0, %c0_i32 : i32, i32
  }
}

</mosaic_0001>

<llo_original>
// kernel: tpu_custom_call.1
$region0: #{tpu_custom_call.1}
  #allocation0 [shape = 'u32[]', space=smem, size = 0x4, offset = 0x4, fixed_abs, tag = 'smem constant byte address 0x4 - core index']
  #allocation1 [shape = 'u32[144,128]{1,0:T(1,128)}', space=vmem, size = 0x12000, scoped, tag = 'internal scratch']
  %s0 = inlined_call_operand.hbm [shape: f32[8,41], index: 0, kind: input, shape index: {}]
  %s1 = inlined_call_operand.hbm [shape: f32[41,256], index: 1, kind: input, shape index: {}]
  %s2 = inlined_call_operand.hbm [shape: f32[256,128], index: 2, kind: input, shape index: {}]
  %s3 = inlined_call_operand.vmem [shape: f32[1,128], index: 3, kind: input, shape index: {}]
  %s4 = inlined_call_operand.hbm [shape: f32[8,128], index: 4, kind: output, shape index: {}]
  %s5 = sld [smem:[#allocation0]]
  $region38: #{tpu_custom_call.1} parent=0
    _
  %s7 = ssub.s32 1, %s5
  %s8 = scalar_select 0, %s7, %s5
  $region1: #{tpu_custom_call.1} parent=0
    #allocation2 [shape = 'u8[4096]{0}', space=vmem, size = 0x1000, scoped, tag = 'input window, operand 0, single buffered']
    #allocation3 [shape = 's32[1]{0}', space=sflag, size = 0x4, scoped, tag = 'scoped memory for tpu_custom_call.1']
    #allocation4 [shape = 's32[1]{0}', space=sflag, size = 0x4, scoped, tag = 'scoped memory for tpu_custom_call.1']
    #allocation5 [shape = 'u8[49152]{0}', space=vmem, size = 0xc000, scoped, tag = 'input window, operand 1, single buffered']
    #allocation6 [shape = 's32[1]{0}', space=sflag, size = 0x4, scoped, tag = 'scoped memory for tpu_custom_call.1']
    #allocation7 [shape = 'u8[131072]{0}', space=vmem, size = 0x20000, scoped, tag = 'input window, operand 2, single buffered']
    #allocation8 [shape = 'u8[4096]{0}', space=vmem, size = 0x1000, scoped, tag = 'output window, operand 0, single buffered']
    %9 = vsyncpa [#allocation3], 0
    %10 = vsyncpa [#allocation6], 0
    %11 = vsyncpa [#allocation4], 0
    // Predicated region
    $region2: #{tpu_custom_call.1} parent=1 // pred_check
      _
    $region3: #{tpu_custom_call.1} parent=1 // pred_check_branch
      %13 = sbr.rel (0) target = $region5
    $region4: #{tpu_custom_call.1} parent=1 // pred_region
      %s15 = ssub.s32 128, 128
      %16 = vsyncadd [#allocation3], %s15
      %s18 = sshll.u32 [#allocation2], 4
      %s19 = int_to_ptr.vmem [resolvable:$true] %s18
      %21 = dma.hbm_to_vmem [thread:$0]  %s0, 128, %s19, [#allocation3]
    $region5: #{tpu_custom_call.1} parent=1 // pred_fallthru
      _
    // Predicated region
    $region6: #{tpu_custom_call.1} parent=1 // pred_check
      _
    $region7: #{tpu_custom_call.1} parent=1 // pred_check_branch
      %23 = sbr.rel (0) target = $region9
    $region8: #{tpu_custom_call.1} parent=1 // pred_region
      %s25 = ssub.s32 1536, 1536
      %26 = vsyncadd [#allocation6], %s25
      %s27 = sshll.u32 [#allocation5], 4
      %s28 = int_to_ptr.vmem [resolvable:$true] %s27
      %33 = dma.hbm_to_vmem [thread:$0]  %s1, 1536, %s28, [#allocation6], 256, 256, 16
    $region9: #{tpu_custom_call.1} parent=1 // pred_fallthru
      _
    // Predicated region
    $region10: #{tpu_custom_call.1} parent=1 // pred_check
      _
    $region11: #{tpu_custom_call.1} parent=1 // pred_check_branch
      %35 = sbr.rel (0) target = $region13
    $region12: #{tpu_custom_call.1} parent=1 // pred_region
      %s37 = ssub.s32 4096, 4096
      %38 = vsyncadd [#allocation6], %s37
      %s39 = sshll.u32 [#allocation7], 4
      %s40 = int_to_ptr.vmem [resolvable:$true] %s39
      %45 = dma.hbm_to_vmem [thread:$0]  %s2, 4096, %s40, [#allocation6], 128, 128, 8
    $region13: #{tpu_custom_call.1} parent=1 // pred_fallthru
      _
    // Predicated region
    $region14: #{tpu_custom_call.1} parent=1 // pred_check
      _
    $region15: #{tpu_custom_call.1} parent=1 // pred_check_branch
      %47 = sbr.rel (0) target = $region17
    $region16: #{tpu_custom_call.1} parent=1 // pred_region
      _
    $region17: #{tpu_custom_call.1} parent=1 // pred_fallthru
      _
    // Predicated region
    $region18: #{tpu_custom_call.1} parent=1 // pred_check
      _
    $region19: #{tpu_custom_call.1} parent=1 // pred_check_branch
      %49 = sbr.rel (0) target = $region21
    $region20: #{tpu_custom_call.1} parent=1 // pred_region
      %50 = dma.done [#allocation3], 128
    $region21: #{tpu_custom_call.1} parent=1 // pred_fallthru
      _
    // Predicated region
    $region22: #{tpu_custom_call.1} parent=1 // pred_check
      _
    $region23: #{tpu_custom_call.1} parent=1 // pred_check_branch
      %52 = sbr.rel (0) target = $region25
    $region24: #{tpu_custom_call.1} parent=1 // pred_region
      %53 = dma.done [#allocation6], 1536
    $region25: #{tpu_custom_call.1} parent=1 // pred_fallthru
      _
    // Predicated region
    $region26: #{tpu_custom_call.1} parent=1 // pred_check
      _
    $region27: #{tpu_custom_call.1} parent=1 // pred_check_branch
      %55 = sbr.rel (0) target = $region29
    $region28: #{tpu_custom_call.1} parent=1 // pred_region
      %56 = dma.done [#allocation6], 4096
    $region29: #{tpu_custom_call.1} parent=1 // pred_fallthru
      _
    %v57 = vld [vmem:[#allocation2] sm:$0xff]
    %v58 = vld [vmem:[#allocation5] sm:$0xff]
    %v59 = vld [vmem:[#allocation5 + $0x8] sm:$0xff]
    %v60 = vld [vmem:[#allocation5 + $0x10] sm:$0xff]
    %v61 = vld [vmem:[#allocation5 + $0x18] sm:$0xff]
    %v62 = vld [vmem:[#allocation5 + $0x20] sm:$0xff]
    %v63 = vld [vmem:[#allocation5 + $0x28] sm:$0xff]
    %v64 = vld [vmem:[#allocation5 + $0x30] sm:$0xff]
    %v65 = vld [vmem:[#allocation5 + $0x38] sm:$0xff]
    %v66 = vld [vmem:[#allocation5 + $0x40] sm:$0xff]
    %v67 = vld [vmem:[#allocation5 + $0x48] sm:$0xff]
    %v68 = vld [vmem:[#allocation5 + $0x50] sm:$0x1]
    %v69 = vld [vmem:[#allocation5 + $0x58] sm:$0x1]
    %vm70 = vcmask 334848
    %v72 = vsel %vm70, %v57, 0
    %vm74 = vcmask 1040384
    %v76 = vsel %vm74, %v68, 0
    %v79 = vsel %vm74, %v69, 0
    %81 = vmatprep.subr.mxu0 0.0
    %82 = vmatpush1.msra.mxu0 0.0
    %83 = vmatprep.subr.mxu0 0.0
    %84 = vmatpush1.msra.mxu0 0.0
    %85 = vmatprep.subr.mxu0 0.0
    %86 = vmatpush1.msra.mxu0 0.0
    %87 = vmatprep.subr.mxu0 0.0
    %88 = vmatpush1.msra.mxu0 0.0
    %89 = vmatprep.subr.mxu0 0.0
    %90 = vmatpush1.msra.mxu0 0.0
    %91 = vmatprep.subr.mxu0 0.0
    %92 = vmatpush1.msra.mxu0 0.0
    %93 = vmatprep.subr.mxu0 0.0
    %94 = vmatpush1.msra.mxu0 0.0
    %95 = vmatprep.subr.mxu0 0.0
    %96 = vmatpush1.msra.mxu0 0.0
    %97 = vmatprep.subr.mxu0 0.0
    %98 = vmatpush1.msra.mxu0 0.0
    %99 = vmatprep.subr.mxu0 0.0
    %100 = vmatpush1.msra.mxu0 0.0
    %101 = vmatprep.subr.mxu0 %v79
    %102 = vmatpush1.msra.mxu0 %v76
    %103 = vmatprep.subr.mxu0 %v67
    %104 = vmatpush1.msra.mxu0 %v66
    %105 = vmatprep.subr.mxu0 %v65
    %106 = vmatpush1.msra.mxu0 %v64
    %107 = vmatprep.subr.mxu0 %v63
    %108 = vmatpush1.msra.mxu0 %v62
    %109 = vmatprep.subr.mxu0 %v61
    %110 = vmatpush1.msra.mxu0 %v60
    %111 = vmatprep.subr.mxu0 %v59
    %112 = vmatpush1.msra.mxu0 %v58
    %113 = vmatprep.subr.mxu0 0.0
    %114 = vmatpush2.msra.mxu0 0.0
    %115 = vmatprep.subr.mxu0 0.0
    %116 = vmatpush2.msra.mxu0 0.0
    %117 = vmatprep.subr.mxu0 0.0
    %118 = vmatpush2.msra.mxu0 0.0
    %119 = vmatprep.subr.mxu0 0.0
    %120 = vmatpush2.msra.mxu0 0.0
    %121 = vmatprep.subr.mxu0 0.0
    %122 = vmatpush2.msra.mxu0 0.0
    %123 = vmatprep.subr.mxu0 0.0
    %124 = vmatpush2.msra.mxu0 0.0
    %125 = vmatprep.subr.mxu0 0.0
    %126 = vmatpush2.msra.mxu0 0.0
    %127 = vmatprep.subr.mxu0 0.0
    %128 = vmatpush2.msra.mxu0 0.0
    %129 = vmatprep.subr.mxu0 0.0
    %130 = vmatpush2.msra.mxu0 0.0
    %131 = vmatprep.subr.mxu0 0.0
    %132 = vmatpush2.msra.mxu0 0.0
    %133 = vmatprep.subr.mxu0 0.0
    %134 = vmatpush2.msra.mxu0 0.0
    %135 = vmatprep.subr.mxu0 0.0
    %136 = vmatpush2.msra.mxu0 0.0
    %137 = vmatprep.subr.mxu0 0.0
    %138 = vmatpush2.msra.mxu0 0.0
    %139 = vmatprep.subr.mxu0 0.0
    %140 = vmatpush2.msra.mxu0 0.0
    %141 = vmatprep.subr.mxu0 0.0
    %142 = vmatpush2.msra.mxu0 0.0
    %143 = vmatprep.subr.mxu0 0.0
    %144 = vmatpush2.msra.mxu0 0.0
    %145 = vmatprep.mubr.f32.mxu0 0.0
    %146 = vmatmul.mubr.f32.gmra.mxu0 %v72
    %v147 = vpop.f32.mrf.mxu0
    %v148 = vadd.f32 0.0, %v147
    %v149 = vpop.f32.mrf.mxu0
    %v150 = vadd.f32 0.0, %v149
    %151 = vdwg.mxu0
    %v152 = vmax.f32 %v148, 0.0
    %v153 = vmax.f32 %v150, 0.0
    %v154 = vld [vmem:[#allocation7] sm:$0xff]
    %v155 = vld [vmem:[#allocation7 + $0x8] sm:$0xff]
    %v156 = vld [vmem:[#allocation7 + $0x10] sm:$0xff]
    %v157 = vld [vmem:[#allocation7 + $0x18] sm:$0xff]
    %v158 = vld [vmem:[#allocation7 + $0x20] sm:$0xff]
    %v159 = vld [vmem:[#allocation7 + $0x28] sm:$0xff]
    %v160 = vld [vmem:[#allocation7 + $0x30] sm:$0xff]
    %v161 = vld [vmem:[#allocation7 + $0x38] sm:$0xff]
    %v162 = vld [vmem:[#allocation7 + $0x40] sm:$0xff]
    %v163 = vld [vmem:[#allocation7 + $0x48] sm:$0xff]
    %v164 = vld [vmem:[#allocation7 + $0x50] sm:$0xff]
    %v165 = vld [vmem:[#allocation7 + $0x58] sm:$0xff]
    %v166 = vld [vmem:[#allocation7 + $0x60] sm:$0xff]
    %v167 = vld [vmem:[#allocation7 + $0x68] sm:$0xff]
    %v168 = vld [vmem:[#allocation7 + $0x70] sm:$0xff]
    %v169 = vld [vmem:[#allocation7 + $0x78] sm:$0xff]
    %v170 = vld [vmem:[#allocation7 + $0x80] sm:$0xff]
    %v171 = vld [vmem:[#allocation7 + $0x88] sm:$0xff]
    %v172 = vld [vmem:[#allocation7 + $0x90] sm:$0xff]
    %v173 = vld [vmem:[#allocation7 + $0x98] sm:$0xff]
    %v174 = vld [vmem:[#allocation7 + $0xa0] sm:$0xff]
    %v175 = vld [vmem:[#allocation7 + $0xa8] sm:$0xff]
    %v176 = vld [vmem:[#allocation7 + $0xb0] sm:$0xff]
    %v177 = vld [vmem:[#allocation7 + $0xb8] sm:$0xff]
    %v178 = vld [vmem:[#allocation7 + $0xc0] sm:$0xff]
    %v179 = vld [vmem:[#allocation7 + $0xc8] sm:$0xff]
    %v180 = vld [vmem:[#allocation7 + $0xd0] sm:$0xff]
    %v181 = vld [vmem:[#allocation7 + $0xd8] sm:$0xff]
    %v182 = vld [vmem:[#allocation7 + $0xe0] sm:$0xff]
    %v183 = vld [vmem:[#allocation7 + $0xe8] sm:$0xff]
    %v184 = vld [vmem:[#allocation7 + $0xf0] sm:$0xff]
    %v185 = vld [vmem:[#allocation7 + $0xf8] sm:$0xff]
    %v186 = vld [vmem:[%s3] sm:$0x1]
    %v188 = vlaneseq
    %v189 = vshrl.u32 %v188, 7
    %v190 = vsub.s32 0, %v189
    %v191 = vrot.slane %v186, %v190
    %193 = vmatprep.subr.mxu0 0.0
    %194 = vmatpush1.msra.mxu0 %v169
    %195 = vmatprep.subr.mxu0 0.0
    %196 = vmatpush1.msra.mxu0 %v168
    %197 = vmatprep.subr.mxu0 0.0
    %198 = vmatpush1.msra.mxu0 %v167
    %199 = vmatprep.subr.mxu0 0.0
    %200 = vmatpush1.msra.mxu0 %v166
    %201 = vmatprep.subr.mxu0 0.0
    %202 = vmatpush1.msra.mxu0 %v165
    %203 = vmatprep.subr.mxu0 0.0
    %204 = vmatpush1.msra.mxu0 %v164
    %205 = vmatprep.subr.mxu0 0.0
    %206 = vmatpush1.msra.mxu0 %v163
    %207 = vmatprep.subr.mxu0 0.0
    %208 = vmatpush1.msra.mxu0 %v162
    %209 = vmatprep.subr.mxu0 0.0
    %210 = vmatpush1.msra.mxu0 %v161
    %211 = vmatprep.subr.mxu0 0.0
    %212 = vmatpush1.msra.mxu0 %v160
    %213 = vmatprep.subr.mxu0 0.0
    %214 = vmatpush1.msra.mxu0 %v159
    %215 = vmatprep.subr.mxu0 0.0
    %216 = vmatpush1.msra.mxu0 %v158
    %217 = vmatprep.subr.mxu0 0.0
    %218 = vmatpush1.msra.mxu0 %v157
    %219 = vmatprep.subr.mxu0 0.0
    %220 = vmatpush1.msra.mxu0 %v156
    %221 = vmatprep.subr.mxu0 0.0
    %222 = vmatpush1.msra.mxu0 %v155
    %223 = vmatprep.subr.mxu0 0.0
    %224 = vmatpush1.msra.mxu0 %v154
    %225 = vmatprep.subr.mxu0 0.0
    %226 = vmatpush2.msra.mxu0 %v185
    %227 = vmatprep.subr.mxu0 0.0
    %228 = vmatpush2.msra.mxu0 %v184
    %229 = vmatprep.subr.mxu0 0.0
    %230 = vmatpush2.msra.mxu0 %v183
    %231 = vmatprep.subr.mxu0 0.0
    %232 = vmatpush2.msra.mxu0 %v182
    %233 = vmatprep.subr.mxu0 0.0
    %234 = vmatpush2.msra.mxu0 %v181
    %235 = vmatprep.subr.mxu0 0.0
    %236 = vmatpush2.msra.mxu0 %v180
    %237 = vmatprep.subr.mxu0 0.0
    %238 = vmatpush2.msra.mxu0 %v179
    %239 = vmatprep.subr.mxu0 0.0
    %240 = vmatpush2.msra.mxu0 %v178
    %241 = vmatprep.subr.mxu0 0.0
    %242 = vmatpush2.msra.mxu0 %v177
    %243 = vmatprep.subr.mxu0 0.0
    %244 = vmatpush2.msra.mxu0 %v176
    %245 = vmatprep.subr.mxu0 0.0
    %246 = vmatpush2.msra.mxu0 %v175
    %247 = vmatprep.subr.mxu0 0.0
    %248 = vmatpush2.msra.mxu0 %v174
    %249 = vmatprep.subr.mxu0 0.0
    %250 = vmatpush2.msra.mxu0 %v173
    %251 = vmatprep.subr.mxu0 0.0
    %252 = vmatpush2.msra.mxu0 %v172
    %253 = vmatprep.subr.mxu0 0.0
    %254 = vmatpush2.msra.mxu0 %v171
    %255 = vmatprep.subr.mxu0 0.0
    %256 = vmatpush2.msra.mxu0 %v170
    %257 = vmatprep.mubr.f32.mxu0 %v153
    %258 = vmatmul.mubr.f32.gmra.mxu0 %v152
    %v259 = vpop.f32.mrf.mxu0
    %v260 = vadd.f32 %v191, %v259
    %v261 = vpop.f32.mrf.mxu0
    %262 = vdwg.mxu0
    %263 = vst [vmem:[#allocation8] sm:$0xff] %v260
    // Predicated region
    $region30: #{tpu_custom_call.1} parent=1 // pred_check
      _
    $region31: #{tpu_custom_call.1} parent=1 // pred_check_branch
      %265 = sbr.rel (0) target = $region33
    $region32: #{tpu_custom_call.1} parent=1 // pred_region
      %s267 = ssub.s32 128, 128
      %268 = vsyncadd [#allocation4], %s267
      %s270 = sshll.u32 [#allocation8], 4
      %s271 = int_to_ptr.vmem [resolvable:$true] %s270
      %273 = dma.vmem_to_hbm [thread:$0]  %s271, 128, %s4, [#allocation4]
    $region33: #{tpu_custom_call.1} parent=1 // pred_fallthru
      _
    // Predicated region
    $region34: #{tpu_custom_call.1} parent=1 // pred_check
      _
    $region35: #{tpu_custom_call.1} parent=1 // pred_check_branch
      %275 = sbr.rel (0) target = $region37
    $region36: #{tpu_custom_call.1} parent=1 // pred_region
      %276 = dma.done [#allocation4], 128
    $region37: #{tpu_custom_call.1} parent=1 // pred_fallthru
      _
    %277 = vsyncpa [#allocation3], 1
    %278 = vsyncpa [#allocation6], 1
    %279 = vsyncpa [#allocation4], 1

</llo_original>
